<compile_context>
chip_gen: v7x
topology: tpu7x:2x2x1
jax: 0.10.0
libtpu: 0.0.40
codegen_flags: <defaults>
</compile_context>

<pallas_src>
import jax
import jax.numpy as jnp
from jax.experimental import pallas as pl
from jax.experimental.pallas import tpu as pltpu


def _round_up(x, m):
    return ((x + m - 1) // m) * m


# Below this vocab size the whole (D, V) weight tile easily fits in VMEM, so we
# never tile or pad V.
_V_TILE_THRESHOLD = 2048
# Vocab tile (and padding granule) used only when V is large; 256-aligned for
# v6e/v7x's 256-wide MXU, also a multiple of 128 for v5e.
_V_TILE = 512


def _linear_kernel(x_ref, w_ref, b_ref, o_ref):
    # x_ref: (TB, D) tile, w_ref: (D, TV) weight tile, b_ref: (1, TV) f32 bias.
    acc = jnp.dot(x_ref[...], w_ref[...], preferred_element_type=jnp.float32)
    o_ref[...] = (acc + b_ref[...]).astype(o_ref.dtype)


def pack_params(weight, bias, *, compute_dtype=None):
    """One-time packing of the nn.Linear parameters.

    weight : (V, D)  PyTorch Linear.weight layout
    bias   : (V,)
    Returns (w_packed (D, V_pad), b_packed (1, V_pad) f32, logical V).

    Call this once when the module's parameters are created/updated; pass the
    results to primitive_type_forward so the transpose/pad/cast never happens
    on the per-call path.
    """
    V, D = weight.shape
    assert bias.shape == (V,)
    w = weight if compute_dtype is None else weight.astype(compute_dtype)
    wt = jnp.transpose(w)                               # (D, V)
    b = bias.astype(jnp.float32).reshape(1, V)          # f32 bias epilogue
    if V <= _V_TILE_THRESHOLD:
        return wt, b, V                                 # no padding for small V
    V_pad = _round_up(V, _V_TILE)
    if V_pad != V:
        wt = jnp.zeros((D, V_pad), wt.dtype).at[:, :V].set(wt)
        b = jnp.zeros((1, V_pad), jnp.float32).at[:, :V].set(b)
    return wt, b, V


def primitive_type_forward(x, w_packed, b_packed, logical_v=None, *,
                           tile_b=None, tile_v=None, compute_dtype=None):
    """y = x @ weight.T + bias  (== PrimitiveTypeModule.forward / nn.Linear).

    x        : (B, D)
    w_packed : (D, V_pad)  from pack_params
    b_packed : (1, V_pad)  float32, from pack_params
    logical_v: original len(vocab) (== V_pad when no padding was applied)
    """
    B, D = x.shape
    Dw, V_pad = w_packed.shape
    assert D == Dw and b_packed.shape == (1, V_pad)
    V = V_pad if logical_v is None else logical_v
    out_dtype = x.dtype

    # Cast before any padding (single pass over x); fast path: no-op.
    x_in = x if (compute_dtype is None or x.dtype == compute_dtype) \
        else x.astype(compute_dtype)
    x_isz = jnp.dtype(x_in.dtype).itemsize
    sublane = 16 if x_in.dtype == jnp.bfloat16 else 8

    # ---- batch tiling: single full-dim tile when small, else <=256-row tiles.
    if tile_b is None:
        if B <= 256:
            tile_b = B
        else:
            n_b = -(-B // 256)
            tile_b = _round_up(-(-B // n_b), sublane)
    if tile_b >= B:
        tile_b, B_pad = B, B                      # full-dim block, no padding
    else:
        tile_b = _round_up(tile_b, sublane)
        B_pad = _round_up(B, tile_b)

    # ---- vocab tiling: full V unless the packed weight is large.
    if tile_v is None:
        tile_v = V_pad if V_pad <= _V_TILE_THRESHOLD else _V_TILE
    if tile_v >= V_pad:
        tile_v = V_pad
    else:
        tile_v = _round_up(tile_v, 256)
        if V_pad % tile_v != 0 or tile_v >= V_pad:
            tile_v = V_pad                        # fall back to a single tile

    # ---- pad x only if actually required.
    if B_pad != B:
        x_in = jnp.zeros((B_pad, D), x_in.dtype).at[:B, :].set(x_in)

    num_b = B_pad // tile_b
    num_v = V_pad // tile_v

    # ---- loop order: keep the larger operand resident / DMA'd once.
    x_bytes = B_pad * D * x_isz
    w_bytes = w_packed.size * jnp.dtype(w_packed.dtype).itemsize
    b_bytes = b_packed.size * 4
    out_isz = jnp.dtype(out_dtype).itemsize
    vocab_outer = (num_b > 1 and num_v > 1 and w_bytes >= x_bytes)

    if vocab_outer:
        grid = (num_v, num_b)                     # W tile fetched once total
        x_spec = pl.BlockSpec((tile_b, D), lambda j, i: (i, 0))
        w_spec = pl.BlockSpec((D, tile_v), lambda j, i: (0, j))
        b_spec = pl.BlockSpec((1, tile_v), lambda j, i: (0, j))
        o_spec = pl.BlockSpec((tile_b, tile_v), lambda j, i: (i, j))
        bytes_accessed = x_bytes * num_v + w_bytes + b_bytes + B_pad * V_pad * out_isz
    else:
        grid = (num_b, num_v)                     # x tile fetched once total
        x_spec = pl.BlockSpec((tile_b, D), lambda i, j: (i, 0))
        w_spec = pl.BlockSpec((D, tile_v), lambda i, j: (0, j))
        b_spec = pl.BlockSpec((1, tile_v), lambda i, j: (0, j))
        o_spec = pl.BlockSpec((tile_b, tile_v), lambda i, j: (i, j))
        bytes_accessed = (x_bytes + w_bytes * num_b + b_bytes * num_b
                          + B_pad * V_pad * out_isz)

    cost = pl.CostEstimate(
        flops=2 * B * D * V,                      # logical FLOPs, not padded
        transcendentals=0,
        bytes_accessed=int(bytes_accessed),
    )

    # VMEM budget from the actual tiles (double-buffered inputs + output),
    # with headroom; portable to v7x's smaller VMEM.
    per_step = (tile_b * D * x_isz
                + D * tile_v * jnp.dtype(w_packed.dtype).itemsize
                + tile_v * 4
                + tile_b * tile_v * out_isz)
    vmem_limit = int(min(64 * 2**20, max(8 * 2**20, 4 * per_step)))

    y = pl.pallas_call(
        _linear_kernel,
        out_shape=jax.ShapeDtypeStruct((B_pad, V_pad), out_dtype),
        grid_spec=pltpu.PrefetchScalarGridSpec(
            num_scalar_prefetch=0,
            grid=grid,
            in_specs=[x_spec, w_spec, b_spec],
            out_specs=o_spec,
        ),
        compiler_params=pltpu.CompilerParams(
            dimension_semantics=("parallel", "parallel"),
            vmem_limit_bytes=vmem_limit,
        ),
        cost_estimate=cost,
    )(x_in, w_packed, b_packed)

    # Slice only if padding was actually introduced.
    if B_pad != B or V_pad != V:
        y = y[:B, :V]
    return y


if __name__ == "__main__":
    # Module hyperparameters (small, consistent with the module's __init__):
    #   args.enc_hid_size = 32, args.field_emb_size = 32  -> D = 64
    #   len(vocab) = 16                                   -> V = 16
    batch, D, V = 8, 64, 16

    key = jax.random.PRNGKey(0)
    kx, kw, kb = jax.random.split(key, 3)
    x = jax.random.normal(kx, (batch, D), dtype=jnp.float32)
    w = jax.random.normal(kw, (V, D), dtype=jnp.float32) * (1.0 / jnp.sqrt(D))
    b = jax.random.normal(kb, (V,), dtype=jnp.float32) * 0.01

    # Params packed ONCE (parameter-init time), reused for every forward call.
    w_p, b_p, v_logical = pack_params(w, b)
    y = jax.block_until_ready(primitive_type_forward(x, w_p, b_p, v_logical))
    y_ref = x @ w.T + b[None, :]
    assert y.shape == (batch, V)
    assert jnp.allclose(y, y_ref, atol=1e-5, rtol=1e-5)

    # Larger ragged case: exercises batch tiling/padding, output slicing and
    # the bf16 compute path (f32 accumulation, f32 bias add).
    B2, D2, V2 = 300, 96, 200
    kx2, kw2, kb2 = jax.random.split(jax.random.PRNGKey(1), 3)
    x2 = jax.random.normal(kx2, (B2, D2), dtype=jnp.float32)
    w2 = jax.random.normal(kw2, (V2, D2), dtype=jnp.float32) * (1.0 / jnp.sqrt(D2))
    b2 = jax.random.normal(kb2, (V2,), dtype=jnp.float32) * 0.01
    w2_p, b2_p, v2_logical = pack_params(w2, b2, compute_dtype=jnp.bfloat16)
    y2 = jax.block_until_ready(
        primitive_type_forward(x2, w2_p, b2_p, v2_logical,
                               compute_dtype=jnp.bfloat16))
    y2_ref = x2 @ w2.T + b2[None, :]
    assert y2.shape == (B2, V2)
    assert jnp.allclose(y2, y2_ref, atol=5e-2, rtol=5e-2)

    print("KERNEL_OK")
</pallas_src>

<mosaic_0001>
module attributes {stable_mosaic.version = 11 : i64} {
  func.func @_linear_kernel(%arg0: i32, %arg1: i32, %arg2: memref<8x64xf32, #tpu.memory_space<vmem>>, %arg3: memref<64x16xf32, #tpu.memory_space<vmem>>, %arg4: memref<1x16xf32, #tpu.memory_space<vmem>>, %arg5: memref<8x16xf32, #tpu.memory_space<vmem>>) attributes {dimension_semantics = [#tpu.dimension_semantics<parallel>, #tpu.dimension_semantics<parallel>], iteration_bounds = array<i64: 1, 1>, scalar_prefetch = 0 : i64, scratch_operands = 0 : i64, tpu.core_type = #tpu.core_type<tc>, window_params = [{transform_indices = @transform_0, window_bounds = array<i64: 8, 64>}, {transform_indices = @transform_1, window_bounds = array<i64: 64, 16>}, {transform_indices = @transform_2, window_bounds = array<i64: 1, 16>}, {transform_indices = @transform_3, window_bounds = array<i64: 8, 16>}]} {
    %c0 = arith.constant 0 : index
    %c0_0 = arith.constant 0 : index
    %0 = vector.load %arg2[%c0, %c0_0] : memref<8x64xf32, #tpu.memory_space<vmem>>, vector<8x64xf32>
    %c0_1 = arith.constant 0 : index
    %c0_2 = arith.constant 0 : index
    %1 = vector.load %arg3[%c0_1, %c0_2] : memref<64x16xf32, #tpu.memory_space<vmem>>, vector<64x16xf32>
    %cst = arith.constant dense<0.000000e+00> : vector<8x16xf32>
    %2 = tpu.matmul %0, %1, %cst {dimension_numbers = #tpu.dot_dimension_numbers<[1], [0], [0], [1], [0, 0, 1, 1], [], []>} : vector<8x64xf32>, vector<64x16xf32>, vector<8x16xf32> -> vector<8x16xf32>
    %c0_3 = arith.constant 0 : index
    %c0_4 = arith.constant 0 : index
    %3 = vector.load %arg4[%c0_3, %c0_4] : memref<1x16xf32, #tpu.memory_space<vmem>>, vector<1x16xf32>
    %4 = vector.broadcast %3 : vector<1x16xf32> to vector<8x16xf32>
    %5 = arith.addf %2, %4 : vector<8x16xf32>
    %c0_5 = arith.constant 0 : index
    %c0_6 = arith.constant 0 : index
    %6 = vector.load %arg5[%c0_5, %c0_6] : memref<8x16xf32, #tpu.memory_space<vmem>>, vector<8x16xf32>
    tpu.vector_store %arg5[%c0_5, %c0_6], %5 {strides = array<i32>} : memref<8x16xf32, #tpu.memory_space<vmem>>, vector<8x16xf32>,
    return
  }
  func.func @transform_0(%arg0: i32, %arg1: i32) -> (i32, i32) {
    %c0_i32 = arith.constant 0 : i32
    %c0_i32_0 = arith.constant 0 : i32
    return %arg0, %c0_i32 : i32, i32
  }
  func.func @transform_1(%arg0: i32, %arg1: i32) -> (i32, i32) {
    %c0_i32 = arith.constant 0 : i32
    %c0_i32_0 = arith.constant 0 : i32
    return %c0_i32, %arg1 : i32, i32
  }
  func.func @transform_2(%arg0: i32, %arg1: i32) -> (i32, i32) {
    %c0_i32 = arith.constant 0 : i32
    %c0_i32_0 = arith.constant 0 : i32
    return %c0_i32, %arg1 : i32, i32
  }
  func.func @transform_3(%arg0: i32, %arg1: i32) -> (i32, i32) {
    %c0_i32 = arith.constant 0 : i32
    return %arg0, %arg1 : i32, i32
  }
}

</mosaic_0001>

<llo_original>
// kernel: tpu_custom_call.1
$region0: #{tpu_custom_call.1}
  #allocation0 [shape = 'u32[]', space=smem, size = 0x4, offset = 0x4, fixed_abs, tag = 'smem constant byte address 0x4 - core index']
  #allocation1 [shape = 'u32[144,128]{1,0:T(1,128)}', space=vmem, size = 0x12000, scoped, tag = 'internal scratch']
  %s0 = inlined_call_operand.vmem [shape: f32[8,64], index: 0, kind: input, shape index: {}]
  %s1 = inlined_call_operand.vmem [shape: f32[64,16], index: 1, kind: input, shape index: {}]
  %s2 = inlined_call_operand.vmem [shape: f32[1,16], index: 2, kind: input, shape index: {}]
  %s3 = inlined_call_operand.hbm [shape: f32[8,16], index: 3, kind: output, shape index: {}]
  %s4 = sld [smem:[#allocation0]]
  $region22: #{tpu_custom_call.1} parent=0
    _
  %s6 = ssub.s32 1, %s4
  %s7 = scalar_select 0, %s6, %s4
  $region1: #{tpu_custom_call.1} parent=0
    #allocation2 [shape = 'u8[4096]{0}', space=vmem, size = 0x1000, scoped, tag = 'output window, operand 0, single buffered']
    #allocation3 [shape = 's32[1]{0}', space=sflag, size = 0x4, scoped, tag = 'scoped memory for tpu_custom_call.1']
    %8 = vsyncpa [#allocation3], 0
    // Predicated region
    $region2: #{tpu_custom_call.1} parent=1 // pred_check
      _
    $region3: #{tpu_custom_call.1} parent=1 // pred_check_branch
      %10 = sbr.rel (0) target = $region5
    $region4: #{tpu_custom_call.1} parent=1 // pred_region
      _
    $region5: #{tpu_custom_call.1} parent=1 // pred_fallthru
      _
    // Predicated region
    $region6: #{tpu_custom_call.1} parent=1 // pred_check
      _
    $region7: #{tpu_custom_call.1} parent=1 // pred_check_branch
      %12 = sbr.rel (0) target = $region9
    $region8: #{tpu_custom_call.1} parent=1 // pred_region
      _
    $region9: #{tpu_custom_call.1} parent=1 // pred_fallthru
      _
    // Predicated region
    $region10: #{tpu_custom_call.1} parent=1 // pred_check
      _
    $region11: #{tpu_custom_call.1} parent=1 // pred_check_branch
      %14 = sbr.rel (0) target = $region13
    $region12: #{tpu_custom_call.1} parent=1 // pred_region
      _
    $region13: #{tpu_custom_call.1} parent=1 // pred_fallthru
      _
    %v15 = vld [vmem:[%s0] sm:$0xff]
    %v16 = vld [vmem:[%s1] sm:$0xff]
    %v17 = vld [vmem:[%s1 + $0x8] sm:$0xff]
    %v18 = vld [vmem:[%s1 + $0x10] sm:$0xff]
    %v19 = vld [vmem:[%s1 + $0x18] sm:$0xff]
    %v20 = vld [vmem:[%s1 + $0x20] sm:$0xff]
    %v21 = vld [vmem:[%s1 + $0x28] sm:$0xff]
    %v22 = vld [vmem:[%s1 + $0x30] sm:$0xff]
    %v23 = vld [vmem:[%s1 + $0x38] sm:$0xff]
    %v24 = vld [vmem:[%s2] sm:$0x1]
    %v26 = vlaneseq
    %v27 = vshrl.u32 %v26, 7
    %v28 = vsub.s32 0, %v27
    %v29 = vrot.slane %v24, %v28
    %vm31 = vcmask 523264
    %v33 = vsel %vm31, %v15, 0
    %35 = vmatprep.subr.mxu0 0.0
    %36 = vmatpush1.msra.mxu0 %v16
    %37 = vmatprep.subr.mxu0 0.0
    %38 = vmatpush1.msra.mxu0 %v17
    %39 = vmatprep.subr.mxu0 0.0
    %40 = vmatpush1.msra.mxu0 %v18
    %41 = vmatprep.subr.mxu0 0.0
    %42 = vmatpush1.msra.mxu0 %v19
    %43 = vmatprep.subr.mxu0 0.0
    %44 = vmatpush1.msra.mxu0 %v20
    %45 = vmatprep.subr.mxu0 0.0
    %46 = vmatpush1.msra.mxu0 %v21
    %47 = vmatprep.subr.mxu0 0.0
    %48 = vmatpush1.msra.mxu0 %v22
    %49 = vmatprep.subr.mxu0 0.0
    %50 = vmatpush1.msra.mxu0 %v23
    %51 = vmatprep.subr.mxu0 0.0
    %52 = vmatpush1.msra.mxu0 0.0
    %53 = vmatprep.subr.mxu0 0.0
    %54 = vmatpush1.msra.mxu0 0.0
    %55 = vmatprep.subr.mxu0 0.0
    %56 = vmatpush1.msra.mxu0 0.0
    %57 = vmatprep.subr.mxu0 0.0
    %58 = vmatpush1.msra.mxu0 0.0
    %59 = vmatprep.subr.mxu0 0.0
    %60 = vmatpush1.msra.mxu0 0.0
    %61 = vmatprep.subr.mxu0 0.0
    %62 = vmatpush1.msra.mxu0 0.0
    %63 = vmatprep.subr.mxu0 0.0
    %64 = vmatpush1.msra.mxu0 0.0
    %65 = vmatprep.subr.mxu0 0.0
    %66 = vmatpush1.msra.mxu0 0.0
    %67 = vmatprep.subr.mxu0 0.0
    %68 = vmatpush1.msra.mxu0 0.0
    %69 = vmatprep.subr.mxu0 0.0
    %70 = vmatpush1.msra.mxu0 0.0
    %71 = vmatprep.subr.mxu0 0.0
    %72 = vmatpush1.msra.mxu0 0.0
    %73 = vmatprep.subr.mxu0 0.0
    %74 = vmatpush1.msra.mxu0 0.0
    %75 = vmatprep.subr.mxu0 0.0
    %76 = vmatpush1.msra.mxu0 0.0
    %77 = vmatprep.subr.mxu0 0.0
    %78 = vmatpush1.msra.mxu0 0.0
    %79 = vmatprep.subr.mxu0 0.0
    %80 = vmatpush1.msra.mxu0 0.0
    %81 = vmatprep.subr.mxu0 0.0
    %82 = vmatpush1.msra.mxu0 0.0
    %83 = vmatprep.subr.mxu0 0.0
    %84 = vmatpush1.msra.mxu0 0.0
    %85 = vmatprep.subr.mxu0 0.0
    %86 = vmatpush1.msra.mxu0 0.0
    %87 = vmatprep.subr.mxu0 0.0
    %88 = vmatpush1.msra.mxu0 0.0
    %89 = vmatprep.subr.mxu0 0.0
    %90 = vmatpush1.msra.mxu0 0.0
    %91 = vmatprep.subr.mxu0 0.0
    %92 = vmatpush1.msra.mxu0 0.0
    %93 = vmatprep.subr.mxu0 0.0
    %94 = vmatpush1.msra.mxu0 0.0
    %95 = vmatprep.subr.mxu0 0.0
    %96 = vmatpush1.msra.mxu0 0.0
    %97 = vmatprep.subr.mxu0 0.0
    %98 = vmatpush1.msra.mxu0 0.0
    %99 = vmatprep.mubr.f32.mxu0 0.0
    %100 = vmatmul.mubr.f32.gmra.mrb[0].mxu0 %v33
    %v101 = vpop.f32.mrb[0].mxu0
    %v102 = vadd.f32 %v29, %v101
    %v103 = vpop.f32.mrb[0].mxu0
    %104 = vdwg.mxu0
    %vm105 = vcmask 130048
    %106 = vst.msk [vmem:[#allocation2] sm:$0xff] %vm105, %v102
    // Predicated region
    $region14: #{tpu_custom_call.1} parent=1 // pred_check
      _
    $region15: #{tpu_custom_call.1} parent=1 // pred_check_branch
      %108 = sbr.rel (0) target = $region17
    $region16: #{tpu_custom_call.1} parent=1 // pred_region
      %s110 = ssub.s32 128, 128
      %111 = vsyncadd [#allocation3], %s110
      %s113 = sshll.u32 [#allocation2], 4
      %s114 = int_to_ptr.vmem [resolvable:$true] %s113
      %116 = dma.vmem_to_hbm [thread:$0]  %s114, 128, %s3, [#allocation3]
    $region17: #{tpu_custom_call.1} parent=1 // pred_fallthru
      _
    // Predicated region
    $region18: #{tpu_custom_call.1} parent=1 // pred_check
      _
    $region19: #{tpu_custom_call.1} parent=1 // pred_check_branch
      %118 = sbr.rel (0) target = $region21
    $region20: #{tpu_custom_call.1} parent=1 // pred_region
      %119 = dma.done [#allocation3], 128
    $region21: #{tpu_custom_call.1} parent=1 // pred_fallthru
      _
    %120 = vsyncpa [#allocation3], 1

</llo_original>
